<compile_context>
chip_gen: v7x
topology: tpu7x:2x2x1
jax: 0.10.0
libtpu: 0.0.40
codegen_flags: <defaults>
</compile_context>

<pallas_src>
import functools

import numpy as np
import jax
import jax.numpy as jnp
from jax.experimental import pallas as pl
from jax.experimental.pallas import tpu as pltpu


def _round_up(x, m):
    return (x + m - 1) // m * m


def _cov_matrix_kernel(yf_ref, cov_ref):
    """cov[j] = yf[j] @ yf[j]^T  (yf pre-scaled by 1/sqrt(S*hw - 1))."""
    yf = yf_ref[...]                                          # (J, C, S*hw) bf16
    cov_ref[...] = jnp.einsum("jcm,jdm->jcd", yf, yf,
                              preferred_element_type=jnp.float32)


def _cov_dist_kernel(cov_ref, x2_ref, w_ref, d_ref, *, slope):
    """One lane-aligned chunk of query columns.

    cov_ref : (J, C, C)  f32, resident across the grid (constant index map)
    x2_ref  : (C, TM)    bf16 query columns (column m = b*hw + k -> x[b, :, k])
    w_ref   : (1, TM)    f32 conv-weight row, w[m] = conv_w[m % hw] (0 in pad)
    d_ref   : (J, TM)    f32 output: conv_w * LeakyReLU(diag(x^T M_j x))
    """
    x2 = x2_ref[...]                                          # bf16 (C, TM)
    covb = cov_ref[...].astype(jnp.bfloat16)                  # (J, C, C)
    # t[j, c, m] = sum_d cov[j, c, d] * x2[d, m]              (MXU, f32 acc)
    t = jnp.einsum("jcd,dm->jcm", covb, x2,
                   preferred_element_type=jnp.float32)        # (J, C, TM)
    # d[j, m] = x2[:, m]^T M_j x2[:, m]                       (VPU mul + reduce)
    d = jnp.sum(t * x2.astype(jnp.float32)[None, :, :], axis=1)
    # LeakyReLU + fused per-column conv weight; the hw-wide segment sum and
    # the bias run on the tiny (J, B*hw) result in the wrapper.
    # TODO(synk): training-mode nn.Dropout would need pltpu.prng_* masking.
    d = jnp.where(d > 0, d, slope * d)
    d_ref[...] = (d * w_ref[...]).astype(d_ref.dtype)


@functools.partial(jax.jit, static_argnames=("negative_slope",))
def cov_forward(x, y_list, conv_w, conv_b, *, negative_slope=0.2):
    """Mirrors cov.forward(x, y) in eval mode.

    x      : (B, C, hw)   query features
    y_list : list of (S, C, hw) support features (one tensor per class)
    conv_w : (hw,)        Conv1d weight of the head matching hw (25 or 441)
    conv_b : scalar       Conv1d bias
    returns: (B, len(y_list)) logits
    """
    B, C, hw = x.shape
    J = len(y_list)
    y = jnp.stack(y_list, axis=0)                             # (J, S, C, hw)
    S = y.shape[1]
    assert conv_w.shape == (hw,), "conv weight must match hw (25 or 441 head)"

    # ---- layout/scale plumbing once in HBM (XLA, cheap) ---------------------
    #   yf[j] = y[j].permute(1,0,2).reshape(C, S*hw) / sqrt(S*hw - 1)   (bf16)
    #   x2    = x.permute(1,0,2).reshape(C, B*hw)                       (bf16)
    inv_sqrt_denom = 1.0 / np.sqrt(float(S * hw - 1))
    yf = (jnp.transpose(y, (0, 2, 1, 3)).reshape(J, C, S * hw)
          * inv_sqrt_denom).astype(jnp.bfloat16)
    x2 = jnp.transpose(x, (1, 0, 2)).reshape(C, B * hw).astype(jnp.bfloat16)

    M = B * hw
    TM = min(512, _round_up(M, 128))            # lane-aligned query-column tile
    M_pad = _round_up(M, TM)
    x2 = jnp.pad(x2, ((0, 0), (0, M_pad - M)))
    # Strided Conv1d(kernel=hw, stride=hw) as a per-column weight row (no kron).
    wrow = jnp.tile(conv_w.astype(jnp.float32), B).reshape(1, M)
    wrow = jnp.pad(wrow, ((0, 0), (0, M_pad - M)))

    # ---- pass 1: per-class covariance matrices (tiny, single launch) --------
    cov = pl.pallas_call(
        _cov_matrix_kernel,
        out_shape=jax.ShapeDtypeStruct((J, C, C), jnp.float32),
        in_specs=[pl.BlockSpec(memory_space=pltpu.MemorySpace.VMEM)],
        out_specs=pl.BlockSpec(memory_space=pltpu.MemorySpace.VMEM),
        compiler_params=pltpu.CompilerParams(
            vmem_limit_bytes=int(min(64 << 20,
                                     max(4 << 20,
                                         4 * (yf.size * 2 + J * C * C * 4))))),
    )(yf)

    # ---- pass 2: query-column sweep, tiled + pipelined -----------------------
    kernel = functools.partial(_cov_dist_kernel, slope=float(negative_slope))
    step_bytes = (2 * (J * C * C * 4            # cov (possibly double-buffered)
                       + C * TM * 2             # x2 chunk (bf16)
                       + TM * 4                 # weight-row chunk
                       + J * TM * 4)            # output chunk
                  + J * C * TM * 4)             # in-kernel (J, C, TM) temp
    vmem_limit = int(min(64 << 20, max(4 << 20, 4 * step_bytes)))

    d = pl.pallas_call(
        kernel,
        out_shape=jax.ShapeDtypeStruct((J, M_pad), jnp.float32),
        grid_spec=pltpu.PrefetchScalarGridSpec(
            num_scalar_prefetch=0,
            grid=(M_pad // TM,),
            in_specs=[
                pl.BlockSpec((J, C, C), lambda i: (0, 0, 0)),   # cov, resident
                pl.BlockSpec((C, TM), lambda i: (0, i)),        # x2 chunk
                pl.BlockSpec((1, TM), lambda i: (0, i)),        # weight chunk
            ],
            out_specs=pl.BlockSpec((J, TM), lambda i: (0, i)),
        ),
        compiler_params=pltpu.CompilerParams(
            dimension_semantics=("parallel",),
            vmem_limit_bytes=vmem_limit),
    )(cov, x2, wrow)

    # ---- hw-wide segment sum + bias on the tiny (J, B*hw) result ------------
    logits = jnp.sum(d[:, :M].reshape(J, B, hw), axis=-1).T   # (B, J)
    return logits + jnp.asarray(conv_b, jnp.float32)


def _reference_np(x, y_list, conv_w, conv_b, negative_slope=0.2):
    """Float64 numpy transcription of cov.forward (eval mode)."""
    x = np.asarray(x, np.float64)
    w = np.asarray(conv_w, np.float64)
    b = float(conv_b)
    B, C, hw = x.shape
    covs = []
    for yj in y_list:
        yj = np.asarray(yj, np.float64)
        S = yj.shape[0]
        sf = np.transpose(yj, (1, 0, 2)).reshape(C, -1)
        covs.append(sf @ sf.T / (hw * S - 1))
    rows = []
    for bq in range(B):
        q = x[bq]                                        # (C, hw)
        segs = [np.diag(q.T @ M @ q) for M in covs]
        rows.append(np.concatenate(segs))
    sim = np.stack(rows)                                 # (B, J*hw)
    act = np.where(sim > 0, sim, negative_slope * sim).reshape(B, len(covs), hw)
    logits = act @ w + b                                 # (B, J)
    # Pre-cancellation magnitude of the conv head, for a bf16-robust tolerance.
    head_mag = float(np.max(np.abs(act) @ np.abs(w)))
    return logits, head_mag


if __name__ == "__main__":
    key = jax.random.PRNGKey(0)
    keys = jax.random.split(key, 8)

    class_num = 4   # number of support classes == len(y)
    shots = 2       # support samples per class
    B = 2           # query batch size
    C = 32          # feature channels
    hw = 25         # spatial size -> picks the kernel_size=25 classifier head

    x = jax.random.normal(keys[0], (B, C, hw), dtype=jnp.float32)
    y_list = [jax.random.normal(keys[1 + j], (shots, C, hw), dtype=jnp.float32)
              for j in range(class_num)]
    conv_w = 0.1 * jax.random.normal(keys[6], (hw,), dtype=jnp.float32)
    conv_b = jnp.float32(0.05)

    out = cov_forward(x, y_list, conv_w, conv_b)
    out = jax.block_until_ready(out)

    ref, head_mag = _reference_np(x, y_list, conv_w, conv_b)
    assert out.shape == (B, class_num)
    # bf16 inputs give ~2^-9 relative error on each hw-term of the head sum
    # (with partial cancellation under f32 accumulation); bound the error by
    # 1% of the output scale plus 1% of the pre-cancellation head magnitude.
    out_np = np.asarray(out, np.float64)
    tol = 1e-2 * np.max(np.abs(ref)) + 1e-2 * head_mag + 1e-4
    max_err = np.max(np.abs(out_np - ref))
    assert max_err <= tol, (max_err, tol)
    print("KERNEL_OK")
</pallas_src>

<mosaic_0001>
module attributes {stable_mosaic.version = 11 : i64} {
  func.func @_cov_matrix_kernel(%arg0: memref<4x32x50xbf16, #tpu.memory_space<vmem>>, %arg1: memref<4x32x32xf32, #tpu.memory_space<vmem>>) attributes {dimension_semantics = [], scalar_prefetch = 0 : i64, scratch_operands = 0 : i64, tpu.core_type = #tpu.core_type<tc>} {
    %c0 = arith.constant 0 : index
    %c0_0 = arith.constant 0 : index
    %c0_1 = arith.constant 0 : index
    %0 = vector.load %arg0[%c0, %c0_0, %c0_1] : memref<4x32x50xbf16, #tpu.memory_space<vmem>>, vector<4x32x50xbf16>
    "tpu.trace_start"() <{level = 10 : i32, message = "jcm,jdm->jcd"}> : () -> ()
    %cst = arith.constant dense<0.000000e+00> : vector<4x32x32xf32>
    %1 = tpu.matmul %0, %0, %cst {dimension_numbers = #tpu.dot_dimension_numbers<[2], [2], [1], [1], [0, 0, 0, 1, 1, 1], [0], [0]>} : vector<4x32x50xbf16>, vector<4x32x50xbf16>, vector<4x32x32xf32> -> vector<4x32x32xf32>
    "tpu.trace_stop"() : () -> ()
    %c0_2 = arith.constant 0 : index
    %c0_3 = arith.constant 0 : index
    %c0_4 = arith.constant 0 : index
    %2 = vector.load %arg1[%c0_2, %c0_3, %c0_4] : memref<4x32x32xf32, #tpu.memory_space<vmem>>, vector<4x32x32xf32>
    tpu.vector_store %arg1[%c0_2, %c0_3, %c0_4], %1 {strides = array<i32>} : memref<4x32x32xf32, #tpu.memory_space<vmem>>, vector<4x32x32xf32>,
    return
  }
}

module attributes {stable_mosaic.version = 11 : i64} {
  func.func @_cov_dist_kernel(%arg0: i32, %arg1: memref<4x32x32xf32, #tpu.memory_space<vmem>>, %arg2: memref<32x128xbf16, #tpu.memory_space<vmem>>, %arg3: memref<1x128xf32, #tpu.memory_space<vmem>>, %arg4: memref<4x128xf32, #tpu.memory_space<vmem>>) attributes {dimension_semantics = [#tpu.dimension_semantics<parallel>], iteration_bounds = array<i64: 1>, scalar_prefetch = 0 : i64, scratch_operands = 0 : i64, tpu.core_type = #tpu.core_type<tc>, window_params = [{pipeline_mode = #tpu.pipeline_mode<synchronous>, transform_indices = @transform_0, window_bounds = array<i64: 4, 32, 32>}, {transform_indices = @transform_1, window_bounds = array<i64: 32, 128>}, {transform_indices = @transform_2, window_bounds = array<i64: 1, 128>}, {transform_indices = @transform_3, window_bounds = array<i64: 4, 128>}]} {
    %c0 = arith.constant 0 : index
    %c0_0 = arith.constant 0 : index
    %0 = vector.load %arg2[%c0, %c0_0] : memref<32x128xbf16, #tpu.memory_space<vmem>>, vector<32x128xbf16>
    %c0_1 = arith.constant 0 : index
    %c0_2 = arith.constant 0 : index
    %c0_3 = arith.constant 0 : index
    %1 = vector.load %arg1[%c0_1, %c0_2, %c0_3] : memref<4x32x32xf32, #tpu.memory_space<vmem>>, vector<4x32x32xf32>
    %2 = arith.truncf %1 : vector<4x32x32xf32> to vector<4x32x32xbf16>
    "tpu.trace_start"() <{level = 10 : i32, message = "jcd,dm->jcm"}> : () -> ()
    %cst = arith.constant dense<0.000000e+00> : vector<4x32x128xf32>
    %3 = tpu.matmul %2, %0, %cst {dimension_numbers = #tpu.dot_dimension_numbers<[2], [0], [0, 1], [1], [0, 0, 0, 1, 1, 1], [], []>} : vector<4x32x32xbf16>, vector<32x128xbf16>, vector<4x32x128xf32> -> vector<4x32x128xf32>
    "tpu.trace_stop"() : () -> ()
    %4 = arith.extf %0 : vector<32x128xbf16> to vector<32x128xf32>
    %5 = vector.shape_cast %4 : vector<32x128xf32> to vector<1x32x128xf32>
    %6 = vector.broadcast %5 : vector<1x32x128xf32> to vector<4x32x128xf32>
    %7 = arith.mulf %3, %6 : vector<4x32x128xf32>
    %cst_4 = arith.constant dense<0.000000e+00> : vector<4x128xf32>
    %8 = vector.multi_reduction <add>, %7, %cst_4 [1] : vector<4x32x128xf32> to vector<4x128xf32>
    %cst_5 = arith.constant 0.000000e+00 : f32
    %9 = vector.broadcast %cst_5 : f32 to vector<4x128xf32>
    %10 = arith.cmpf ogt, %8, %9 : vector<4x128xf32>
    %cst_6 = arith.constant 2.000000e-01 : f32
    %11 = vector.broadcast %cst_6 : f32 to vector<4x128xf32>
    %12 = arith.mulf %11, %8 : vector<4x128xf32>
    %13 = arith.select %10, %8, %12 : vector<4x128xi1>, vector<4x128xf32>
    %c0_7 = arith.constant 0 : index
    %c0_8 = arith.constant 0 : index
    %14 = vector.load %arg3[%c0_7, %c0_8] : memref<1x128xf32, #tpu.memory_space<vmem>>, vector<1x128xf32>
    %15 = vector.broadcast %14 : vector<1x128xf32> to vector<4x128xf32>
    %16 = arith.mulf %13, %15 : vector<4x128xf32>
    %c0_9 = arith.constant 0 : index
    %c0_10 = arith.constant 0 : index
    %17 = vector.load %arg4[%c0_9, %c0_10] : memref<4x128xf32, #tpu.memory_space<vmem>>, vector<4x128xf32>
    tpu.vector_store %arg4[%c0_9, %c0_10], %16 {strides = array<i32>} : memref<4x128xf32, #tpu.memory_space<vmem>>, vector<4x128xf32>,
    return
  }
  func.func @transform_0(%arg0: i32) -> (i32, i32, i32) {
    %c0_i32 = arith.constant 0 : i32
    %c0_i32_0 = arith.constant 0 : i32
    %c0_i32_1 = arith.constant 0 : i32
    %c0_i32_2 = arith.constant 0 : i32
    return %c0_i32, %c0_i32_0, %c0_i32_1 : i32, i32, i32
  }
  func.func @transform_1(%arg0: i32) -> (i32, i32) {
    %c0_i32 = arith.constant 0 : i32
    %c0_i32_0 = arith.constant 0 : i32
    return %c0_i32, %arg0 : i32, i32
  }
  func.func @transform_2(%arg0: i32) -> (i32, i32) {
    %c0_i32 = arith.constant 0 : i32
    %c0_i32_0 = arith.constant 0 : i32
    return %c0_i32, %arg0 : i32, i32
  }
  func.func @transform_3(%arg0: i32) -> (i32, i32) {
    %c0_i32 = arith.constant 0 : i32
    %c0_i32_0 = arith.constant 0 : i32
    return %c0_i32, %arg0 : i32, i32
  }
}

</mosaic_0001>

<llo_original>
// kernel: cov_forward.2
$region0: #{cov_forward.2}
  #allocation0 [shape = 'u32[]', space=smem, size = 0x4, offset = 0x4, fixed_abs, tag = 'smem constant byte address 0x4 - core index']
  #allocation1 [shape = 'u32[144,128]{1,0:T(1,128)}', space=vmem, size = 0x12000, scoped, tag = 'internal scratch']
  %s0 = inlined_call_operand.vmem [shape: bf16[4,32,50], index: 0, kind: input, shape index: {}]
  %s1 = inlined_call_operand.vmem [shape: f32[4,32,32], index: 1, kind: output, shape index: {}]
  %s2 = sld [smem:[#allocation0]]
  $region14: #{cov_forward.2} parent=0
    _
  %s4 = ssub.s32 1, %s2
  %s5 = scalar_select 0, %s4, %s2
  // Predicated region
  $region2: #{cov_forward.2} parent=0 // pred_check
    _
  $region3: #{cov_forward.2} parent=0 // pred_check_branch
    %7 = sbr.rel (0) target = $region5
  $region4: #{cov_forward.2} parent=0 // pred_region
    _
  $region5: #{cov_forward.2} parent=0 // pred_fallthru
    _
  %v9 = vld [vmem:[%s0] sm:$0xf]
  %v10 = vld [vmem:[%s0 + $0x4] sm:$0xf]
  %v11 = vld [vmem:[%s0 + $0x8] sm:$0xf]
  %v12 = vld [vmem:[%s0 + $0xc] sm:$0xf]
  %v13 = vld [vmem:[%s0 + $0x10] sm:$0xf]
  %v14 = vld [vmem:[%s0 + $0x14] sm:$0xf]
  %v15 = vld [vmem:[%s0 + $0x18] sm:$0xf]
  %v16 = vld [vmem:[%s0 + $0x1c] sm:$0xf]
  %v17 = vld [vmem:[%s0 + $0x20] sm:$0xf]
  %v18 = vld [vmem:[%s0 + $0x24] sm:$0xf]
  %v19 = vld [vmem:[%s0 + $0x28] sm:$0xf]
  %v20 = vld [vmem:[%s0 + $0x2c] sm:$0xf]
  %v21 = vld [vmem:[%s0 + $0x30] sm:$0xf]
  %v22 = vld [vmem:[%s0 + $0x34] sm:$0xf]
  %v23 = vld [vmem:[%s0 + $0x38] sm:$0xf]
  %v24 = vld [vmem:[%s0 + $0x3c] sm:$0xf]
  %v29 = vunpack.c.l.b16 %v9
  %v30 = vunpack.c.l.b16 %v10
  %v31 = vunpack.c.l.b16 %v11
  %v32 = vunpack.c.l.b16 %v12
  %v33 = vpack.c.b16 %v30, %v29
  %v34 = vpack.c.b16 %v32, %v31
  %vm35 = vcmask 408576
  %v37 = vsel %vm35, %v33, 0
  %v40 = vsel %vm35, %v34, 0
  %42 = vmatprep.subr.bf16.mxu0 0
  %43 = vmatpush1.bf16.xpose.msra.mxu0 %v37
  %44 = vmatprep.subr.bf16.mxu0 0
  %45 = vmatpush1.bf16.xpose.msra.mxu0 %v40
  %46 = vmatprep.subr.bf16.mxu0 0
  %47 = vmatpush1.bf16.xpose.msra.mxu0 0
  %48 = vmatprep.subr.bf16.mxu0 0
  %49 = vmatpush1.bf16.xpose.msra.mxu0 0
  %50 = vmatprep.subr.bf16.mxu0 0
  %51 = vmatpush1.bf16.xpose.msra.mxu0 0
  %52 = vmatprep.subr.bf16.mxu0 0
  %53 = vmatpush1.bf16.xpose.msra.mxu0 0
  %54 = vmatprep.subr.bf16.mxu0 0
  %55 = vmatpush1.bf16.xpose.msra.mxu0 0
  %56 = vmatprep.subr.bf16.mxu0 0
  %57 = vmatpush1.bf16.xpose.msra.mxu0 0
  %58 = vmatprep.subr.bf16.mxu0 0
  %59 = vmatpush1.bf16.xpose.msra.mxu0 0
  %60 = vmatprep.subr.bf16.mxu0 0
  %61 = vmatpush1.bf16.xpose.msra.mxu0 0
  %62 = vmatprep.subr.bf16.mxu0 0
  %63 = vmatpush1.bf16.xpose.msra.mxu0 0
  %64 = vmatprep.subr.bf16.mxu0 0
  %65 = vmatpush1.bf16.xpose.msra.mxu0 0
  %66 = vmatprep.subr.bf16.mxu0 0
  %67 = vmatpush1.bf16.xpose.msra.mxu0 0
  %68 = vmatprep.subr.bf16.mxu0 0
  %69 = vmatpush1.bf16.xpose.msra.mxu0 0
  %70 = vmatprep.subr.bf16.mxu0 0
  %71 = vmatpush1.bf16.xpose.msra.mxu0 0
  %72 = vmatprep.subr.bf16.mxu0 0
  %73 = vmatpush1.bf16.xpose.msra.mxu0 0
  %74 = vmatprep.mubr.bf16.mxu0 0
  %75 = vmatmul.mubr.bf16.gmra.mrb[0].mxu0 %v37
  %v76 = vpop.f32.mrb[0].mxu0
  %v77 = vadd.f32 0.0, %v76
  %v78 = vpop.f32.mrb[0].mxu0
  %v79 = vpop.f32.mrb[0].mxu0
  %v80 = vadd.f32 0.0, %v79
  %v81 = vpop.f32.mrb[0].mxu0
  %82 = vmatprep.mubr.bf16.mxu0 0
  %83 = vmatmul.mubr.bf16.gmra.mrb[0].mxu0 %v40
  %v84 = vpop.f32.mrb[0].mxu0
  %v85 = vadd.f32 0.0, %v84
  %v86 = vpop.f32.mrb[0].mxu0
  %v87 = vpop.f32.mrb[0].mxu0
  %v88 = vadd.f32 0.0, %v87
  %v89 = vpop.f32.mrb[0].mxu0
  %90 = vdwg.mxu0
  %v95 = vunpack.c.l.b16 %v13
  %v96 = vunpack.c.l.b16 %v14
  %v97 = vunpack.c.l.b16 %v15
  %v98 = vunpack.c.l.b16 %v16
  %v99 = vpack.c.b16 %v96, %v95
  %v100 = vpack.c.b16 %v98, %v97
  %v102 = vsel %vm35, %v99, 0
  %v105 = vsel %vm35, %v100, 0
  %107 = vmatprep.subr.bf16.mxu0 0
  %108 = vmatpush1.bf16.xpose.msra.mxu0 %v102
  %109 = vmatprep.subr.bf16.mxu0 0
  %110 = vmatpush1.bf16.xpose.msra.mxu0 %v105
  %111 = vmatprep.subr.bf16.mxu0 0
  %112 = vmatpush1.bf16.xpose.msra.mxu0 0
  %113 = vmatprep.subr.bf16.mxu0 0
  %114 = vmatpush1.bf16.xpose.msra.mxu0 0
  %115 = vmatprep.subr.bf16.mxu0 0
  %116 = vmatpush1.bf16.xpose.msra.mxu0 0
  %117 = vmatprep.subr.bf16.mxu0 0
  %118 = vmatpush1.bf16.xpose.msra.mxu0 0
  %119 = vmatprep.subr.bf16.mxu0 0
  %120 = vmatpush1.bf16.xpose.msra.mxu0 0
  %121 = vmatprep.subr.bf16.mxu0 0
  %122 = vmatpush1.bf16.xpose.msra.mxu0 0
  %123 = vmatprep.subr.bf16.mxu0 0
  %124 = vmatpush1.bf16.xpose.msra.mxu0 0
  %125 = vmatprep.subr.bf16.mxu0 0
  %126 = vmatpush1.bf16.xpose.msra.mxu0 0
  %127 = vmatprep.subr.bf16.mxu0 0
  %128 = vmatpush1.bf16.xpose.msra.mxu0 0
  %129 = vmatprep.subr.bf16.mxu0 0
  %130 = vmatpush1.bf16.xpose.msra.mxu0 0
  %131 = vmatprep.subr.bf16.mxu0 0
  %132 = vmatpush1.bf16.xpose.msra.mxu0 0
  %133 = vmatprep.subr.bf16.mxu0 0
  %134 = vmatpush1.bf16.xpose.msra.mxu0 0
  %135 = vmatprep.subr.bf16.mxu0 0
  %136 = vmatpush1.bf16.xpose.msra.mxu0 0
  %137 = vmatprep.subr.bf16.mxu0 0
  %138 = vmatpush1.bf16.xpose.msra.mxu0 0
  %139 = vmatprep.mubr.bf16.mxu0 0
  %140 = vmatmul.mubr.bf16.gmra.mrb[0].mxu0 %v102
  %v141 = vpop.f32.mrb[0].mxu0
  %v142 = vadd.f32 0.0, %v141
  %v143 = vpop.f32.mrb[0].mxu0
  %v144 = vpop.f32.mrb[0].mxu0
  %v145 = vadd.f32 0.0, %v144
  %v146 = vpop.f32.mrb[0].mxu0
  %147 = vmatprep.mubr.bf16.mxu0 0
  %148 = vmatmul.mubr.bf16.gmra.mrb[0].mxu0 %v105
  %v149 = vpop.f32.mrb[0].mxu0
  %v150 = vadd.f32 0.0, %v149
  %v151 = vpop.f32.mrb[0].mxu0
  %v152 = vpop.f32.mrb[0].mxu0
  %v153 = vadd.f32 0.0, %v152
  %v154 = vpop.f32.mrb[0].mxu0
  %155 = vdwg.mxu0
  %v160 = vunpack.c.l.b16 %v17
  %v161 = vunpack.c.l.b16 %v18
  %v162 = vunpack.c.l.b16 %v19
  %v163 = vunpack.c.l.b16 %v20
  %v164 = vpack.c.b16 %v161, %v160
  %v165 = vpack.c.b16 %v163, %v162
  %v167 = vsel %vm35, %v164, 0
  %v170 = vsel %vm35, %v165, 0
  %172 = vmatprep.subr.bf16.mxu0 0
  %173 = vmatpush1.bf16.xpose.msra.mxu0 %v167
  %174 = vmatprep.subr.bf16.mxu0 0
  %175 = vmatpush1.bf16.xpose.msra.mxu0 %v170
  %176 = vmatprep.subr.bf16.mxu0 0
  %177 = vmatpush1.bf16.xpose.msra.mxu0 0
  %178 = vmatprep.subr.bf16.mxu0 0
  %179 = vmatpush1.bf16.xpose.msra.mxu0 0
  %180 = vmatprep.subr.bf16.mxu0 0
  %181 = vmatpush1.bf16.xpose.msra.mxu0 0
  %182 = vmatprep.subr.bf16.mxu0 0
  %183 = vmatpush1.bf16.xpose.msra.mxu0 0
  %184 = vmatprep.subr.bf16.mxu0 0
  %185 = vmatpush1.bf16.xpose.msra.mxu0 0
  %186 = vmatprep.subr.bf16.mxu0 0
  %187 = vmatpush1.bf16.xpose.msra.mxu0 0
  %188 = vmatprep.subr.bf16.mxu0 0
  %189 = vmatpush1.bf16.xpose.msra.mxu0 0
  %190 = vmatprep.subr.bf16.mxu0 0
  %191 = vmatpush1.bf16.xpose.msra.mxu0 0
  %192 = vmatprep.subr.bf16.mxu0 0
  %193 = vmatpush1.bf16.xpose.msra.mxu0 0
  %194 = vmatprep.subr.bf16.mxu0 0
  %195 = vmatpush1.bf16.xpose.msra.mxu0 0
  %196 = vmatprep.subr.bf16.mxu0 0
  %197 = vmatpush1.bf16.xpose.msra.mxu0 0
  %198 = vmatprep.subr.bf16.mxu0 0
  %199 = vmatpush1.bf16.xpose.msra.mxu0 0
  %200 = vmatprep.subr.bf16.mxu0 0
  %201 = vmatpush1.bf16.xpose.msra.mxu0 0
  %202 = vmatprep.subr.bf16.mxu0 0
  %203 = vmatpush1.bf16.xpose.msra.mxu0 0
  %204 = vmatprep.mubr.bf16.mxu0 0
  %205 = vmatmul.mubr.bf16.gmra.mrb[0].mxu0 %v167
  %v206 = vpop.f32.mrb[0].mxu0
  %v207 = vadd.f32 0.0, %v206
  %v208 = vpop.f32.mrb[0].mxu0
  %v209 = vpop.f32.mrb[0].mxu0
  %v210 = vadd.f32 0.0, %v209
  %v211 = vpop.f32.mrb[0].mxu0
  %212 = vmatprep.mubr.bf16.mxu0 0
  %213 = vmatmul.mubr.bf16.gmra.mrb[0].mxu0 %v170
  %v214 = vpop.f32.mrb[0].mxu0
  %v215 = vadd.f32 0.0, %v214
  %v216 = vpop.f32.mrb[0].mxu0
  %v217 = vpop.f32.mrb[0].mxu0
  %v218 = vadd.f32 0.0, %v217
  %v219 = vpop.f32.mrb[0].mxu0
  %220 = vdwg.mxu0
  %v225 = vunpack.c.l.b16 %v21
  %v226 = vunpack.c.l.b16 %v22
  %v227 = vunpack.c.l.b16 %v23
  %v228 = vunpack.c.l.b16 %v24
  %v229 = vpack.c.b16 %v226, %v225
  %v230 = vpack.c.b16 %v228, %v227
  %v232 = vsel %vm35, %v229, 0
  %v235 = vsel %vm35, %v230, 0
  %237 = vmatprep.subr.bf16.mxu0 0
  %238 = vmatpush1.bf16.xpose.msra.mxu0 %v232
  %239 = vmatprep.subr.bf16.mxu0 0
  %240 = vmatpush1.bf16.xpose.msra.mxu0 %v235
  %241 = vmatprep.subr.bf16.mxu0 0
  %242 = vmatpush1.bf16.xpose.msra.mxu0 0
  %243 = vmatprep.subr.bf16.mxu0 0
  %244 = vmatpush1.bf16.xpose.msra.mxu0 0
  %245 = vmatprep.subr.bf16.mxu0 0
  %246 = vmatpush1.bf16.xpose.msra.mxu0 0
  %247 = vmatprep.subr.bf16.mxu0 0
  %248 = vmatpush1.bf16.xpose.msra.mxu0 0
  %249 = vmatprep.subr.bf16.mxu0 0
  %250 = vmatpush1.bf16.xpose.msra.mxu0 0
  %251 = vmatprep.subr.bf16.mxu0 0
  %252 = vmatpush1.bf16.xpose.msra.mxu0 0
  %253 = vmatprep.subr.bf16.mxu0 0
  %254 = vmatpush1.bf16.xpose.msra.mxu0 0
  %255 = vmatprep.subr.bf16.mxu0 0
  %256 = vmatpush1.bf16.xpose.msra.mxu0 0
  %257 = vmatprep.subr.bf16.mxu0 0
  %258 = vmatpush1.bf16.xpose.msra.mxu0 0
  %259 = vmatprep.subr.bf16.mxu0 0
  %260 = vmatpush1.bf16.xpose.msra.mxu0 0
  %261 = vmatprep.subr.bf16.mxu0 0
  %262 = vmatpush1.bf16.xpose.msra.mxu0 0
  %263 = vmatprep.subr.bf16.mxu0 0
  %264 = vmatpush1.bf16.xpose.msra.mxu0 0
  %265 = vmatprep.subr.bf16.mxu0 0
  %266 = vmatpush1.bf16.xpose.msra.mxu0 0
  %267 = vmatprep.subr.bf16.mxu0 0
  %268 = vmatpush1.bf16.xpose.msra.mxu0 0
  %269 = vmatprep.mubr.bf16.mxu0 0
  %270 = vmatmul.mubr.bf16.gmra.mrb[0].mxu0 %v232
  %v271 = vpop.f32.mrb[0].mxu0
  %v272 = vadd.f32 0.0, %v271
  %v273 = vpop.f32.mrb[0].mxu0
  %v274 = vpop.f32.mrb[0].mxu0
  %v275 = vadd.f32 0.0, %v274
  %v276 = vpop.f32.mrb[0].mxu0
  %277 = vmatprep.mubr.bf16.mxu0 0
  %278 = vmatmul.mubr.bf16.gmra.mrb[0].mxu0 %v235
  %v279 = vpop.f32.mrb[0].mxu0
  %v280 = vadd.f32 0.0, %v279
  %v281 = vpop.f32.mrb[0].mxu0
  %v282 = vpop.f32.mrb[0].mxu0
  %v283 = vadd.f32 0.0, %v282
  %v284 = vpop.f32.mrb[0].mxu0
  %285 = vdwg.mxu0
  %vm286 = vcmask 261120
  %287 = vst.msk [vmem:[%s1] sm:$0xff] %vm286, %v77
  %288 = vst.msk [vmem:[%s1 + $0x8] sm:$0xff] %vm286, %v80
  %289 = vst.msk [vmem:[%s1 + $0x10] sm:$0xff] %vm286, %v85
  %290 = vst.msk [vmem:[%s1 + $0x18] sm:$0xff] %vm286, %v88
  %291 = vst.msk [vmem:[%s1 + $0x20] sm:$0xff] %vm286, %v142
  %292 = vst.msk [vmem:[%s1 + $0x28] sm:$0xff] %vm286, %v145
  %293 = vst.msk [vmem:[%s1 + $0x30] sm:$0xff] %vm286, %v150
  %294 = vst.msk [vmem:[%s1 + $0x38] sm:$0xff] %vm286, %v153
  %295 = vst.msk [vmem:[%s1 + $0x40] sm:$0xff] %vm286, %v207
  %296 = vst.msk [vmem:[%s1 + $0x48] sm:$0xff] %vm286, %v210
  %297 = vst.msk [vmem:[%s1 + $0x50] sm:$0xff] %vm286, %v215
  %298 = vst.msk [vmem:[%s1 + $0x58] sm:$0xff] %vm286, %v218
  %299 = vst.msk [vmem:[%s1 + $0x60] sm:$0xff] %vm286, %v272
  %300 = vst.msk [vmem:[%s1 + $0x68] sm:$0xff] %vm286, %v275
  %301 = vst.msk [vmem:[%s1 + $0x70] sm:$0xff] %vm286, %v280
  %302 = vst.msk [vmem:[%s1 + $0x78] sm:$0xff] %vm286, %v283
  // Predicated region
  $region6: #{cov_forward.2} parent=0 // pred_check
    _
  $region7: #{cov_forward.2} parent=0 // pred_check_branch
    %304 = sbr.rel (0) target = $region9
  $region8: #{cov_forward.2} parent=0 // pred_region
    _
  $region9: #{cov_forward.2} parent=0 // pred_fallthru
    _
  // Predicated region
  $region10: #{cov_forward.2} parent=0 // pred_check
    _
  $region11: #{cov_forward.2} parent=0 // pred_check_branch
    %306 = sbr.rel (0) target = $region13
  $region12: #{cov_forward.2} parent=0 // pred_region
    _
  $region13: #{cov_forward.2} parent=0 // pred_fallthru
    _

// kernel: tile.8
$region0: #{tile.8}
  #allocation0 [shape = 's32[1]{0}', space=sflag, size = 0x4, scoped, tag = 'scoped memory for tile.8']
  %s0 = inlined_call_operand.vmem [shape: f32[25], index: 0, kind: input, shape index: {}]
  %s1 = inlined_call_operand.vmem [shape: f32[2,25], index: 1, kind: output, shape index: {}]
  // Predicated region
  $region2: #{tile.8} parent=0 // pred_check
    _
  $region3: #{tile.8} parent=0 // pred_check_branch
    %3 = sbr.rel (0) target = $region5
  $region4: #{tile.8} parent=0 // pred_region
    _
  $region5: #{tile.8} parent=0 // pred_fallthru
    _
  %v4 = vld [vmem:[%s0] ss:$0 sm:$0xff]
  %5 = vst [vmem:[%s1] sm:$0x3] %v4

// kernel: tile.9
$region0: #{tile.9}
  %s0 = inlined_call_operand.vmem [shape: f32[2,25], index: 0, kind: input, shape index: {}]
  %s1 = inlined_call_operand.vmem [shape: f32[1,50], index: 1, kind: output, shape index: {}]
  $region1: #{tile.9} parent=0
    #allocation0 [shape = 'u8[4096]{0}', space=vmem, size = 0x1000, scoped, tag = 'scoped mem for output reshape']
    #allocation1 [shape = 'u8[4096]{0}', space=vmem, size = 0x1000, scoped, tag = 'scoped mem for input reshape']
    %s3 = sshllo.u32 0, 2
    %v4 = vld [vmem:[%s0] sm:%s3]
    %5 = vst [vmem:[#allocation1] sm:%s3] %v4
    %v6 = vld [vmem:[#allocation1] sm:$0x1]
    %vm7 = vcmask 203776
    %8 = vst.msk [vmem:[#allocation0] sm:$0x1] %vm7, %v6
    %s9 = scalar_lea.vmem [#allocation1], 1
    %v10 = vld [vmem:[%s9] sm:$0x1]
    %11 = vrot.lane.b32.xlu0 %v10, 25
    %v12 = vpop.permute.xlu0 %11
    %vm13 = vcmask 408776
    %14 = vst.msk [vmem:[#allocation0] sm:$0x1] %vm13, %v12
    %s16 = sshllo.u32 0, 1
    %v18 = vld [vmem:[#allocation0] sm:%s16]
    %s19 = sshllo.u32 0, 1
    %20 = vst [vmem:[%s1] sm:%s19] %v18

// kernel: cov_forward.3
$region0: #{cov_forward.3}
  #allocation0 [shape = 'u32[]', space=smem, size = 0x4, offset = 0x4, fixed_abs, tag = 'smem constant byte address 0x4 - core index']
  #allocation1 [shape = 'u32[144,128]{1,0:T(1,128)}', space=vmem, size = 0x12000, scoped, tag = 'internal scratch']
  %s0 = inlined_call_operand.vmem [shape: f32[4,32,32], index: 0, kind: input, shape index: {}]
  %s1 = inlined_call_operand.vmem [shape: bf16[32,128], index: 1, kind: input, shape index: {}]
  %s2 = inlined_call_operand.vmem [shape: f32[1,128], index: 2, kind: input, shape index: {}]
  %s3 = inlined_call_operand.vmem [shape: f32[4,128], index: 3, kind: output, shape index: {}]
  %s4 = sld [smem:[#allocation0]]
  $region22: #{cov_forward.3} parent=0
    _
  %s6 = ssub.s32 1, %s4
  %s7 = scalar_select 0, %s6, %s4
  // Predicated region
  $region2: #{cov_forward.3} parent=0 // pred_check
    _
  $region3: #{cov_forward.3} parent=0 // pred_check_branch
    %9 = sbr.rel (0) target = $region5
  $region4: #{cov_forward.3} parent=0 // pred_region
    _
  $region5: #{cov_forward.3} parent=0 // pred_fallthru
    _
  // Predicated region
  $region6: #{cov_forward.3} parent=0 // pred_check
    _
  $region7: #{cov_forward.3} parent=0 // pred_check_branch
    %11 = sbr.rel (0) target = $region9
  $region8: #{cov_forward.3} parent=0 // pred_region
    _
  $region9: #{cov_forward.3} parent=0 // pred_fallthru
    _
  // Predicated region
  $region10: #{cov_forward.3} parent=0 // pred_check
    _
  $region11: #{cov_forward.3} parent=0 // pred_check_branch
    %13 = sbr.rel (0) target = $region13
  $region12: #{cov_forward.3} parent=0 // pred_region
    _
  $region13: #{cov_forward.3} parent=0 // pred_fallthru
    _
  %v15 = vld [vmem:[%s1] sm:$0xf]
  %v16 = vld [vmem:[%s1 + $0x4] sm:$0xf]
  %v17 = vld [vmem:[%s1 + $0x8] sm:$0xf]
  %v18 = vld [vmem:[%s1 + $0xc] sm:$0xf]
  %v19 = vld [vmem:[%s0] sm:$0xff]
  %v20 = vld [vmem:[%s0 + $0x8] sm:$0xff]
  %v21 = vld [vmem:[%s0 + $0x10] sm:$0xff]
  %v22 = vld [vmem:[%s0 + $0x18] sm:$0xff]
  %v23 = vld [vmem:[%s0 + $0x20] sm:$0xff]
  %v24 = vld [vmem:[%s0 + $0x28] sm:$0xff]
  %v25 = vld [vmem:[%s0 + $0x30] sm:$0xff]
  %v26 = vld [vmem:[%s0 + $0x38] sm:$0xff]
  %v27 = vld [vmem:[%s0 + $0x40] sm:$0xff]
  %v28 = vld [vmem:[%s0 + $0x48] sm:$0xff]
  %v29 = vld [vmem:[%s0 + $0x50] sm:$0xff]
  %v30 = vld [vmem:[%s0 + $0x58] sm:$0xff]
  %v31 = vld [vmem:[%s0 + $0x60] sm:$0xff]
  %v32 = vld [vmem:[%s0 + $0x68] sm:$0xff]
  %v33 = vld [vmem:[%s0 + $0x70] sm:$0xff]
  %v34 = vld [vmem:[%s0 + $0x78] sm:$0xff]
  %v35 = vpack.c.bf16 %v20, %v19
  %v36 = vpack.c.bf16 %v22, %v21
  %v37 = vpack.c.bf16 %v24, %v23
  %v38 = vpack.c.bf16 %v26, %v25
  %v39 = vpack.c.bf16 %v28, %v27
  %v40 = vpack.c.bf16 %v30, %v29
  %v41 = vpack.c.bf16 %v32, %v31
  %v42 = vpack.c.bf16 %v34, %v33
  %v47 = vunpack.c.l.b16 %v15
  %v48 = vunpack.c.l.b16 %v16
  %v49 = vunpack.c.l.b16 %v17
  %v50 = vunpack.c.l.b16 %v18
  %v51 = vpack.c.b16 %v48, %v47
  %v52 = vpack.c.b16 %v50, %v49
  %vm55 = vcmask 261120
  %v57 = vsel %vm55, %v35, 0
  %v60 = vsel %vm55, %v36, 0
  %v63 = vsel %vm55, %v37, 0
  %v66 = vsel %vm55, %v38, 0
  %v69 = vsel %vm55, %v39, 0
  %v72 = vsel %vm55, %v40, 0
  %v75 = vsel %vm55, %v41, 0
  %v78 = vsel %vm55, %v42, 0
  %80 = vmatprep.subr.bf16.mxu0 0
  %81 = vmatpush1.bf16.msra.mxu0 %v51
  %82 = vmatprep.subr.bf16.mxu0 0
  %83 = vmatpush1.bf16.msra.mxu0 %v52
  %84 = vmatprep.subr.bf16.mxu0 0
  %85 = vmatpush1.bf16.msra.mxu0 0
  %86 = vmatprep.subr.bf16.mxu0 0
  %87 = vmatpush1.bf16.msra.mxu0 0
  %88 = vmatprep.subr.bf16.mxu0 0
  %89 = vmatpush1.bf16.msra.mxu0 0
  %90 = vmatprep.subr.bf16.mxu0 0
  %91 = vmatpush1.bf16.msra.mxu0 0
  %92 = vmatprep.subr.bf16.mxu0 0
  %93 = vmatpush1.bf16.msra.mxu0 0
  %94 = vmatprep.subr.bf16.mxu0 0
  %95 = vmatpush1.bf16.msra.mxu0 0
  %96 = vmatprep.subr.bf16.mxu0 0
  %97 = vmatpush1.bf16.msra.mxu0 0
  %98 = vmatprep.subr.bf16.mxu0 0
  %99 = vmatpush1.bf16.msra.mxu0 0
  %100 = vmatprep.subr.bf16.mxu0 0
  %101 = vmatpush1.bf16.msra.mxu0 0
  %102 = vmatprep.subr.bf16.mxu0 0
  %103 = vmatpush1.bf16.msra.mxu0 0
  %104 = vmatprep.subr.bf16.mxu0 0
  %105 = vmatpush1.bf16.msra.mxu0 0
  %106 = vmatprep.subr.bf16.mxu0 0
  %107 = vmatpush1.bf16.msra.mxu0 0
  %108 = vmatprep.subr.bf16.mxu0 0
  %109 = vmatpush1.bf16.msra.mxu0 0
  %110 = vmatprep.subr.bf16.mxu0 0
  %111 = vmatpush1.bf16.msra.mxu0 0
  %112 = vmatprep.mubr.bf16.mxu0 0
  %113 = vmatmul.mubr.bf16.gmra.mrb[0].mxu0 %v57
  %v114 = vpop.f32.mrb[0].mxu0
  %v115 = vadd.f32 0.0, %v114
  %v116 = vpop.f32.mrb[0].mxu0
  %v117 = vpop.f32.mrb[0].mxu0
  %v118 = vadd.f32 0.0, %v117
  %v119 = vpop.f32.mrb[0].mxu0
  %120 = vmatprep.mubr.bf16.mxu0 0
  %121 = vmatmul.mubr.bf16.gmra.mrb[0].mxu0 %v60
  %v122 = vpop.f32.mrb[0].mxu0
  %v123 = vadd.f32 0.0, %v122
  %v124 = vpop.f32.mrb[0].mxu0
  %v125 = vpop.f32.mrb[0].mxu0
  %v126 = vadd.f32 0.0, %v125
  %v127 = vpop.f32.mrb[0].mxu0
  %128 = vmatprep.mubr.bf16.mxu0 0
  %129 = vmatmul.mubr.bf16.gmra.mrb[0].mxu0 %v63
  %v130 = vpop.f32.mrb[0].mxu0
  %v131 = vadd.f32 0.0, %v130
  %v132 = vpop.f32.mrb[0].mxu0
  %v133 = vpop.f32.mrb[0].mxu0
  %v134 = vadd.f32 0.0, %v133
  %v135 = vpop.f32.mrb[0].mxu0
  %136 = vmatprep.mubr.bf16.mxu0 0
  %137 = vmatmul.mubr.bf16.gmra.mrb[0].mxu0 %v66
  %v138 = vpop.f32.mrb[0].mxu0
  %v139 = vadd.f32 0.0, %v138
  %v140 = vpop.f32.mrb[0].mxu0
  %v141 = vpop.f32.mrb[0].mxu0
  %v142 = vadd.f32 0.0, %v141
  %v143 = vpop.f32.mrb[0].mxu0
  %144 = vmatprep.mubr.bf16.mxu0 0
  %145 = vmatmul.mubr.bf16.gmra.mrb[0].mxu0 %v69
  %v146 = vpop.f32.mrb[0].mxu0
  %v147 = vadd.f32 0.0, %v146
  %v148 = vpop.f32.mrb[0].mxu0
  %v149 = vpop.f32.mrb[0].mxu0
  %v150 = vadd.f32 0.0, %v149
  %v151 = vpop.f32.mrb[0].mxu0
  %152 = vmatprep.mubr.bf16.mxu0 0
  %153 = vmatmul.mubr.bf16.gmra.mrb[0].mxu0 %v72
  %v154 = vpop.f32.mrb[0].mxu0
  %v155 = vadd.f32 0.0, %v154
  %v156 = vpop.f32.mrb[0].mxu0
  %v157 = vpop.f32.mrb[0].mxu0
  %v158 = vadd.f32 0.0, %v157
  %v159 = vpop.f32.mrb[0].mxu0
  %160 = vmatprep.mubr.bf16.mxu0 0
  %161 = vmatmul.mubr.bf16.gmra.mrb[0].mxu0 %v75
  %v162 = vpop.f32.mrb[0].mxu0
  %v163 = vadd.f32 0.0, %v162
  %v164 = vpop.f32.mrb[0].mxu0
  %v165 = vpop.f32.mrb[0].mxu0
  %v166 = vadd.f32 0.0, %v165
  %v167 = vpop.f32.mrb[0].mxu0
  %168 = vmatprep.mubr.bf16.mxu0 0
  %169 = vmatmul.mubr.bf16.gmra.mrb[0].mxu0 %v78
  %v170 = vpop.f32.mrb[0].mxu0
  %v171 = vadd.f32 0.0, %v170
  %v172 = vpop.f32.mrb[0].mxu0
  %v173 = vpop.f32.mrb[0].mxu0
  %v174 = vadd.f32 0.0, %v173
  %v175 = vpop.f32.mrb[0].mxu0
  %176 = vdwg.mxu0
  %v177 = vunpack.c.l.bf16 %v15
  %v178 = vunpack.c.l.bf16 %v16
  %v179 = vunpack.c.l.bf16 %v17
  %v180 = vunpack.c.l.bf16 %v18
  %v181 = vmul.f32 %v115, %v177
  %v182 = vmul.f32 %v118, %v178
  %v183 = vmul.f32 %v123, %v179
  %v184 = vmul.f32 %v126, %v180
  %v185 = vmul.f32 %v131, %v177
  %v186 = vmul.f32 %v134, %v178
  %v187 = vmul.f32 %v139, %v179
  %v188 = vmul.f32 %v142, %v180
  %v189 = vmul.f32 %v147, %v177
  %v190 = vmul.f32 %v150, %v178
  %v191 = vmul.f32 %v155, %v179
  %v192 = vmul.f32 %v158, %v180
  %v193 = vmul.f32 %v163, %v177
  %v194 = vmul.f32 %v166, %v178
  %v195 = vmul.f32 %v171, %v179
  %v196 = vmul.f32 %v174, %v180
  %v197 = vadd.f32 %v181, %v182
  %v198 = vadd.f32 %v197, %v183
  %v199 = vadd.f32 %v198, %v184
  %v200 = vrot.slane %v199, 4
  %v201 = vadd.f32 %v199, %v200
  %v202 = vrot.slane %v201, 2
  %v203 = vadd.f32 %v201, %v202
  %v204 = vrot.slane %v203, 1
  %v205 = vadd.f32 %v203, %v204
  %v206 = vadd.f32 %v185, %v186
  %v207 = vadd.f32 %v206, %v187
  %v208 = vadd.f32 %v207, %v188
  %v209 = vrot.slane %v208, 4
  %v210 = vadd.f32 %v208, %v209
  %v211 = vrot.slane %v210, 2
  %v212 = vadd.f32 %v210, %v211
  %v213 = vrot.slane %v212, 1
  %v214 = vadd.f32 %v212, %v213
  %v215 = vadd.f32 %v189, %v190
  %v216 = vadd.f32 %v215, %v191
  %v217 = vadd.f32 %v216, %v192
  %v218 = vrot.slane %v217, 4
  %v219 = vadd.f32 %v217, %v218
  %v220 = vrot.slane %v219, 2
  %v221 = vadd.f32 %v219, %v220
  %v222 = vrot.slane %v221, 1
  %v223 = vadd.f32 %v221, %v222
  %v224 = vadd.f32 %v193, %v194
  %v225 = vadd.f32 %v224, %v195
  %v226 = vadd.f32 %v225, %v196
  %v227 = vrot.slane %v226, 4
  %v228 = vadd.f32 %v226, %v227
  %v229 = vrot.slane %v228, 2
  %v230 = vadd.f32 %v228, %v229
  %v231 = vrot.slane %v230, 1
  %v232 = vadd.f32 %v230, %v231
  %vm233 = vcmp.gt.f32.partialorder %v205, 0.0
  %vm234 = vcmp.gt.f32.partialorder %v214, 0.0
  %vm235 = vcmp.gt.f32.partialorder %v223, 0.0
  %vm236 = vcmp.gt.f32.partialorder %v232, 0.0
  %v237 = vmul.f32 %v205, 0.2
  %v238 = vmul.f32 %v214, 0.2
  %v239 = vmul.f32 %v223, 0.2
  %v240 = vmul.f32 %v232, 0.2
  %v241 = vsel %vm233, %v205, %v237
  %v242 = vsel %vm234, %v214, %v238
  %v243 = vsel %vm235, %v223, %v239
  %v244 = vsel %vm236, %v232, %v240
  %v245 = vld [vmem:[%s2] sm:$0x1]
  %v247 = vlaneseq
  %v248 = vshrl.u32 %v247, 7
  %v249 = vsub.s32 0, %v248
  %v250 = vrot.slane %v245, %v249
  %v252 = vmul.f32 %v241, %v250
  %v253 = vmul.f32 %v242, %v250
  %v254 = vmul.f32 %v243, %v250
  %v255 = vmul.f32 %v244, %v250
  %v260 = vrot.slane %v253, 7
  %vm261 = vcmask 1041409
  %v262 = vsel %vm261, %v260, %v252
  %v263 = vrot.slane %v254, 6
  %vm264 = vcmask 1042434
  %v265 = vsel %vm264, %v263, %v262
  %v266 = vrot.slane %v255, 5
  %vm267 = vcmask 1043459
  %v268 = vsel %vm267, %v266, %v265
  %270 = vst [vmem:[%s3] sm:$0xf] %v268
  // Predicated region
  $region14: #{cov_forward.3} parent=0 // pred_check
    _
  $region15: #{cov_forward.3} parent=0 // pred_check_branch
    %272 = sbr.rel (0) target = $region17
  $region16: #{cov_forward.3} parent=0 // pred_region
    _
  $region17: #{cov_forward.3} parent=0 // pred_fallthru
    _
  // Predicated region
  $region18: #{cov_forward.3} parent=0 // pred_check
    _
  $region19: #{cov_forward.3} parent=0 // pred_check_branch
    %274 = sbr.rel (0) target = $region21
  $region20: #{cov_forward.3} parent=0 // pred_region
    _
  $region21: #{cov_forward.3} parent=0 // pred_fallthru
    _

</llo_original>
